<compile_context>
chip_gen: v5e
topology: v5e:2x2
jax: 0.10.0
libtpu: 0.0.40
codegen_flags: <defaults>
</compile_context>

<pallas_src>
from typing import NamedTuple

import jax
import jax.numpy as jnp
from jax import lax
from jax.experimental import pallas as pl
from jax.experimental.pallas import tpu as pltpu


def _round_up(x, m):
    return ((x + m - 1) // m) * m


def _vmem_capacity_bytes():
    try:
        return int(pltpu.get_tpu_info().vmem_capacity_bytes)
    except Exception:
        return 128 << 20  # v5e/v6e physical VMEM; conservative fallback


class PreparedEntityTable(NamedTuple):
    data: jax.Array      # (N_pad, D) in ent_dtype, zero-padded rows
    num_entities: int
    tile_n: int          # pow2 * 128, divides N_pad


def _pick_tile_n(N, D, ent_itemsize, *, target_tile_bytes=4 << 20, max_tile_n=8192):
    """Entity tile rows: pow2*128, sized so one streamed tile is ~1-4 MiB."""
    rows = max(128, int(target_tile_bytes) // max(1, int(D) * int(ent_itemsize)))
    units = max(1, rows // 128)
    units = 1 << (units.bit_length() - 1)          # largest pow2 <= units
    tn = 128 * units
    n_cap = 128 * int(pl.next_power_of_2(int(pl.cdiv(max(int(N), 1), 128))))
    return int(max(128, min(tn, max_tile_n, n_cap)))


def prepare_entity_table(all_ent_emb, *, ent_dtype=jnp.bfloat16, tile_n=None):
    """Pad + cast the entity table once; reuse the result across forward calls."""
    N, D = all_ent_emb.shape
    if tile_n is None:
        tn = _pick_tile_n(N, D, jnp.dtype(ent_dtype).itemsize)
    else:
        tn = 128 * int(pl.next_power_of_2(int(pl.cdiv(int(tile_n), 128))))
    N_pad = _round_up(max(N, tn), tn)
    data = jnp.pad(all_ent_emb, ((0, N_pad - N), (0, 0))).astype(ent_dtype)
    return PreparedEntityTable(data=data, num_entities=N, tile_n=int(tn))


def _distmult_kernel(h_ref, ent_ref, out_ref):
    # (tb, D) x (tn, D) -> (tb, tn); contract the feature axis of BOTH
    # operands so no transposed copy of the streamed entity tile is ever
    # materialized.  bf16 operands, f32 accumulation on the MXU.
    out_ref[...] = lax.dot_general(
        h_ref[...], ent_ref[...],
        dimension_numbers=(((1,), (1,)), ((), ())),
        preferred_element_type=jnp.float32,
    ).astype(out_ref.dtype)


def distmult_forward(e1_emb, rel_emb, all_ent_emb, inverse_rel_emb=None, *,
                     ent_dtype=jnp.bfloat16, out_dtype=jnp.float32,
                     tile_n=None, tile_b=256, vmem_frac=0.85):
    """DistMult scores: (e1 * rel) @ all_ent.T, streamed over entity tiles.

    `all_ent_emb` may be a raw (N, D) array or a PreparedEntityTable (reuse
    the prepared table across calls to avoid a per-call pad+cast HBM pass).
    """
    B, D = e1_emb.shape

    if isinstance(all_ent_emb, PreparedEntityTable):
        table = all_ent_emb
    else:
        table = prepare_entity_table(all_ent_emb, ent_dtype=ent_dtype, tile_n=tile_n)
    ent_p = table.data
    N = table.num_entities
    tn = int(table.tile_n)
    N_pad, D2 = ent_p.shape
    assert D2 == D, "entity table feature dim must match embedding dim"

    # Fuse h = e1 * rel (and the bf16 cast) in the wrapper: one narrow operand
    # for the kernel instead of two resident double-buffered f32 blocks.
    if inverse_rel_emb is None:
        rel_eff = rel_emb
    else:
        rel_eff = 0.5 * (rel_emb + inverse_rel_emb)
    h = (e1_emb.astype(jnp.float32) * rel_eff.astype(jnp.float32)).astype(ent_p.dtype)

    ent_itemsize = jnp.dtype(ent_p.dtype).itemsize
    h_itemsize = jnp.dtype(h.dtype).itemsize
    out_itemsize = jnp.dtype(out_dtype).itemsize

    B_pad0 = _round_up(max(B, 8), 8)
    tb = max(8, min(_round_up(int(tile_b), 8), B_pad0))

    # VMEM budget (double-buffered blocks) with headroom below physical capacity.
    cap = int(_vmem_capacity_bytes() * vmem_frac)

    def budget(tn_, tb_):
        return (2 * tn_ * D * ent_itemsize        # entity tiles (double-buffered)
                + 2 * tb_ * D * h_itemsize        # h tiles
                + 2 * tb_ * tn_ * out_itemsize    # output tiles
                + (4 << 20))                      # Mosaic internal scratch margin

    while budget(tn, tb) > cap and (tn > 128 or tb > 8):
        if tn > 128:
            tn //= 2                              # stays pow2*128 -> divides N_pad
        else:
            tb = max(8, (tb // 2) // 8 * 8 or 8)
    assert N_pad % tn == 0

    B_pad = _round_up(B_pad0, tb)
    h_p = jnp.pad(h, ((0, B_pad - B), (0, 0)))

    vmem_limit = int(min(max(budget(tn, tb), 16 << 20), cap))

    # N is the OUTER grid axis: each entity tile is fetched from HBM once and
    # reused across every inner B step (constant block index skips re-DMA).
    grid = (N_pad // tn, B_pad // tb)

    out = pl.pallas_call(
        _distmult_kernel,
        out_shape=jax.ShapeDtypeStruct((B_pad, N_pad), out_dtype),
        grid=grid,
        in_specs=[
            pl.BlockSpec((tb, D), lambda j, i: (i, 0)),   # h tile (full, unpadded D)
            pl.BlockSpec((tn, D), lambda j, i: (j, 0)),   # entity tile, row-major
        ],
        out_specs=pl.BlockSpec((tb, tn), lambda j, i: (i, j)),
        compiler_params=pltpu.CompilerParams(
            dimension_semantics=("parallel", "parallel"),
            vmem_limit_bytes=vmem_limit),
    )(h_p, ent_p)

    return out[:B, :N]


# ----------------------------- references ---------------------------------

def reference_f32(e1, rel, all_ent, inverse_rel=None):
    """Pure-JAX f32 reference matching the PyTorch module in eval mode."""
    rel_eff = rel if inverse_rel is None else 0.5 * (rel + inverse_rel)
    return (e1 * rel_eff) @ all_ent.T


def reference_matched(e1, rel, all_ent, inverse_rel=None, ent_dtype=jnp.bfloat16):
    """Reference with the same rounding as the kernel (bf16 operands, f32 acc)."""
    rel_eff = rel if inverse_rel is None else 0.5 * (rel + inverse_rel)
    h = (e1 * rel_eff).astype(ent_dtype).astype(jnp.float32)
    a = all_ent.astype(ent_dtype).astype(jnp.float32)
    return h @ a.T


if __name__ == "__main__":
    B, D, N = 2, 32, 64   # batch, emb_dim, num_entities (toy)
    key = jax.random.PRNGKey(0)
    k_e, k_r, k_i, k_a = jax.random.split(key, 4)
    e1 = jax.random.normal(k_e, (B, D), jnp.float32)
    rel = jax.random.normal(k_r, (B, D), jnp.float32)
    inv_rel = jax.random.normal(k_i, (B, D), jnp.float32)
    all_ent = jax.random.normal(k_a, (N, D), jnp.float32)

    # --- path without inverse relation (raw table) ---
    out = jax.block_until_ready(distmult_forward(e1, rel, all_ent))
    assert out.shape == (B, N)
    ref_m = reference_matched(e1, rel, all_ent)
    assert jnp.allclose(out, ref_m, atol=2e-3, rtol=2e-3), \
        "mismatch vs matched-precision reference"
    ref_f = reference_f32(e1, rel, all_ent)
    assert jnp.allclose(out, ref_f, atol=1e-1, rtol=5e-2), \
        "mismatch vs f32 reference (beyond expected bf16 rounding)"

    # --- path with inverse relation ---
    out_inv = jax.block_until_ready(
        distmult_forward(e1, rel, all_ent, inverse_rel_emb=inv_rel))
    ref_m_inv = reference_matched(e1, rel, all_ent, inverse_rel=inv_rel)
    assert jnp.allclose(out_inv, ref_m_inv, atol=2e-3, rtol=2e-3), \
        "mismatch vs matched-precision reference (inverse-rel path)"

    # --- prepared / cached entity table path (reused across calls) ---
    table = prepare_entity_table(all_ent)
    out_cached = jax.block_until_ready(distmult_forward(e1, rel, table))
    assert jnp.allclose(out_cached, ref_m, atol=2e-3, rtol=2e-3), \
        "mismatch on cached-table path"
    out_cached2 = jax.block_until_ready(
        distmult_forward(e1, rel, table, inverse_rel_emb=inv_rel))
    assert jnp.allclose(out_cached2, ref_m_inv, atol=2e-3, rtol=2e-3), \
        "mismatch on cached-table path (inverse-rel)"

    print("KERNEL_OK")
</pallas_src>

<mosaic_0001>
module attributes {stable_mosaic.version = 11 : i64} {
  func.func @_distmult_kernel(%arg0: i32, %arg1: i32, %arg2: memref<8x32xbf16, #tpu.memory_space<vmem>>, %arg3: memref<128x32xbf16, #tpu.memory_space<vmem>>, %arg4: memref<8x128xf32, #tpu.memory_space<vmem>>) attributes {dimension_semantics = [#tpu.dimension_semantics<parallel>, #tpu.dimension_semantics<parallel>], iteration_bounds = array<i64: 1, 1>, scalar_prefetch = 0 : i64, scratch_operands = 0 : i64, tpu.core_type = #tpu.core_type<tc>, window_params = [{transform_indices = @transform_0, window_bounds = array<i64: 8, 32>}, {transform_indices = @transform_1, window_bounds = array<i64: 128, 32>}, {transform_indices = @transform_2, window_bounds = array<i64: 8, 128>}]} {
    %c0 = arith.constant 0 : index
    %c0_0 = arith.constant 0 : index
    %0 = vector.load %arg2[%c0, %c0_0] : memref<8x32xbf16, #tpu.memory_space<vmem>>, vector<8x32xbf16>
    %c0_1 = arith.constant 0 : index
    %c0_2 = arith.constant 0 : index
    %1 = vector.load %arg3[%c0_1, %c0_2] : memref<128x32xbf16, #tpu.memory_space<vmem>>, vector<128x32xbf16>
    %cst = arith.constant dense<0.000000e+00> : vector<8x128xf32>
    %2 = tpu.matmul %0, %1, %cst {dimension_numbers = #tpu.dot_dimension_numbers<[1], [1], [0], [0], [0, 0, 1, 0], [], []>} : vector<8x32xbf16>, vector<128x32xbf16>, vector<8x128xf32> -> vector<8x128xf32>
    %c0_3 = arith.constant 0 : index
    %c0_4 = arith.constant 0 : index
    %3 = vector.load %arg4[%c0_3, %c0_4] : memref<8x128xf32, #tpu.memory_space<vmem>>, vector<8x128xf32>
    tpu.vector_store %arg4[%c0_3, %c0_4], %2 {strides = array<i32>} : memref<8x128xf32, #tpu.memory_space<vmem>>, vector<8x128xf32>,
    return
  }
  func.func @transform_0(%arg0: i32, %arg1: i32) -> (i32, i32) {
    %c0_i32 = arith.constant 0 : i32
    %c0_i32_0 = arith.constant 0 : i32
    return %arg1, %c0_i32 : i32, i32
  }
  func.func @transform_1(%arg0: i32, %arg1: i32) -> (i32, i32) {
    %c0_i32 = arith.constant 0 : i32
    %c0_i32_0 = arith.constant 0 : i32
    return %arg0, %c0_i32 : i32, i32
  }
  func.func @transform_2(%arg0: i32, %arg1: i32) -> (i32, i32) {
    %c0_i32 = arith.constant 0 : i32
    return %arg1, %arg0 : i32, i32
  }
}

</mosaic_0001>

<llo_original>
// kernel: tpu_custom_call.1
$region0: #{tpu_custom_call.1}
  #allocation0 [shape = 'u32[]', space=smem, size = 0x4, offset = 0x4, fixed_abs, tag = 'smem constant byte address 0x4 - core index']
  #allocation1 [shape = 'u32[72,128]{1,0:T(1,128)}', space=vmem, size = 0x9000, scoped, tag = 'internal scratch']
  %s0 = inlined_call_operand.vmem [shape: bf16[8,32], index: 0, kind: input, shape index: {}]
  %s1 = inlined_call_operand.vmem [shape: bf16[128,32], index: 1, kind: input, shape index: {}]
  %s2 = inlined_call_operand.hbm [shape: f32[8,128], index: 2, kind: output, shape index: {}]
  %s3 = sld [smem:[#allocation0]]
  $region18: #{tpu_custom_call.1} parent=0
    _
  %s5 = ssub.s32 1, %s3
  %s6 = scalar_select 0, %s5, %s3
  $region1: #{tpu_custom_call.1} parent=0
    #allocation2 [shape = 'u8[4096]{0}', space=vmem, size = 0x1000, scoped, tag = 'output window, operand 0, single buffered']
    #allocation3 [shape = 's32[1]{0}', space=sflag, size = 0x4, scoped, tag = 'scoped memory for tpu_custom_call.1']
    %7 = vsyncpa [#allocation3], 0
    // Predicated region
    $region2: #{tpu_custom_call.1} parent=1 // pred_check
      _
    $region3: #{tpu_custom_call.1} parent=1 // pred_check_branch
      %9 = sbr.rel (0) target = $region5
    $region4: #{tpu_custom_call.1} parent=1 // pred_region
      _
    $region5: #{tpu_custom_call.1} parent=1 // pred_fallthru
      _
    // Predicated region
    $region6: #{tpu_custom_call.1} parent=1 // pred_check
      _
    $region7: #{tpu_custom_call.1} parent=1 // pred_check_branch
      %11 = sbr.rel (0) target = $region9
    $region8: #{tpu_custom_call.1} parent=1 // pred_region
      _
    $region9: #{tpu_custom_call.1} parent=1 // pred_fallthru
      _
    %v12 = vld [vmem:[%s0] sm:$0xf]
    %v13 = vld [vmem:[%s1] sm:$0xf]
    %v14 = vld [vmem:[%s1 + $0x4] sm:$0xf]
    %v15 = vld [vmem:[%s1 + $0x8] sm:$0xf]
    %v16 = vld [vmem:[%s1 + $0xc] sm:$0xf]
    %v17 = vld [vmem:[%s1 + $0x10] sm:$0xf]
    %v18 = vld [vmem:[%s1 + $0x14] sm:$0xf]
    %v19 = vld [vmem:[%s1 + $0x18] sm:$0xf]
    %v20 = vld [vmem:[%s1 + $0x1c] sm:$0xf]
    %v21 = vld [vmem:[%s1 + $0x20] sm:$0xf]
    %v22 = vld [vmem:[%s1 + $0x24] sm:$0xf]
    %v23 = vld [vmem:[%s1 + $0x28] sm:$0xf]
    %v24 = vld [vmem:[%s1 + $0x2c] sm:$0xf]
    %v25 = vld [vmem:[%s1 + $0x30] sm:$0xf]
    %v26 = vld [vmem:[%s1 + $0x34] sm:$0xf]
    %v27 = vld [vmem:[%s1 + $0x38] sm:$0xf]
    %v28 = vld [vmem:[%s1 + $0x3c] sm:$0xf]
    %v45 = vunpack.c.l.b16 %v13
    %v46 = vunpack.c.l.b16 %v14
    %v47 = vunpack.c.l.b16 %v15
    %v48 = vunpack.c.l.b16 %v16
    %v49 = vunpack.c.l.b16 %v17
    %v50 = vunpack.c.l.b16 %v18
    %v51 = vunpack.c.l.b16 %v19
    %v52 = vunpack.c.l.b16 %v20
    %v53 = vunpack.c.l.b16 %v21
    %v54 = vunpack.c.l.b16 %v22
    %v55 = vunpack.c.l.b16 %v23
    %v56 = vunpack.c.l.b16 %v24
    %v57 = vunpack.c.l.b16 %v25
    %v58 = vunpack.c.l.b16 %v26
    %v59 = vunpack.c.l.b16 %v27
    %v60 = vunpack.c.l.b16 %v28
    %v61 = vpack.c.b16 %v46, %v45
    %v62 = vpack.c.b16 %v48, %v47
    %v63 = vpack.c.b16 %v50, %v49
    %v64 = vpack.c.b16 %v52, %v51
    %v65 = vpack.c.b16 %v54, %v53
    %v66 = vpack.c.b16 %v56, %v55
    %v67 = vpack.c.b16 %v58, %v57
    %v68 = vpack.c.b16 %v60, %v59
    %vm69 = vcmask 261120
    %v71 = vsel %vm69, %v12, 0
    %v74 = vsel %vm69, %v61, 0
    %v77 = vsel %vm69, %v62, 0
    %v80 = vsel %vm69, %v63, 0
    %v83 = vsel %vm69, %v64, 0
    %v86 = vsel %vm69, %v65, 0
    %v89 = vsel %vm69, %v66, 0
    %v92 = vsel %vm69, %v67, 0
    %v95 = vsel %vm69, %v68, 0
    %97 = vmatpush.bf16.xpose.msra.mxu0 %v95
    %98 = vmatpush.bf16.xpose.msra.mxu0 %v92
    %99 = vmatpush.bf16.xpose.msra.mxu0 %v89
    %100 = vmatpush.bf16.xpose.msra.mxu0 %v86
    %101 = vmatpush.bf16.xpose.msra.mxu0 %v83
    %102 = vmatpush.bf16.xpose.msra.mxu0 %v80
    %103 = vmatpush.bf16.xpose.msra.mxu0 %v77
    %104 = vmatpush.bf16.xpose.msra.mxu0 %v74
    %105 = vmatmul.bf16.gmra.mxu0 %v71
    %v106 = vpop.f32.mrf.mxu0
    %v107 = vadd.f32 0.0, %v106
    %v108 = vpop.f32.mrf.mxu0
    %109 = vdwg.mxu0
    %110 = vst [vmem:[#allocation2] sm:$0xff] %v107
    // Predicated region
    $region10: #{tpu_custom_call.1} parent=1 // pred_check
      _
    $region11: #{tpu_custom_call.1} parent=1 // pred_check_branch
      %112 = sbr.rel (0) target = $region13
    $region12: #{tpu_custom_call.1} parent=1 // pred_region
      %114 = vsyncadd [#allocation3], 0
      %s116 = sshll.u32 [#allocation2], 4
      %s117 = int_to_ptr.vmem [resolvable:$true] %s116
      %s118 = sshll.u32 %s2, 4
      %s119 = int_to_ptr.hbm [resolvable:$true] %s118
      %121 = dma.vmem_to_hbm [thread:$0]  %s117, 128, %s119, [#allocation3]
    $region13: #{tpu_custom_call.1} parent=1 // pred_fallthru
      _
    // Predicated region
    $region14: #{tpu_custom_call.1} parent=1 // pred_check
      _
    $region15: #{tpu_custom_call.1} parent=1 // pred_check_branch
      %123 = sbr.rel (0) target = $region17
    $region16: #{tpu_custom_call.1} parent=1 // pred_region
      %125 = dma.done [#allocation3], 128
    $region17: #{tpu_custom_call.1} parent=1 // pred_fallthru
      _
    %126 = vsyncpa [#allocation3], 1

</llo_original>
